<compile_context>
chip_gen: v7x
topology: tpu7x:2x2x1
jax: 0.10.0
libtpu: 0.0.40
codegen_flags: <defaults>
</compile_context>

<pallas_src>
import functools

import jax
import jax.numpy as jnp
from jax.experimental import pallas as pl
from jax.experimental.pallas import tpu as pltpu


_SUBLANE = 16           # multiple of 16 satisfies both f32 (8) and bf16 (16) sublane tiling
_MAX_TOKEN_TILE = 4096  # keep per-step DMAs / latencies reasonable


def _round_up(x, m):
    return ((x + m - 1) // m) * m


def _vmem_capacity_bytes():
    """Per-core VMEM capacity; conservative fallback is v7x's 64 MiB per TensorCore."""
    try:
        return int(pltpu.get_tpu_info().vmem_capacity_bytes)
    except Exception:
        return 64 << 20


def _pick_layer_block(L):
    for lb in (4, 3, 2):
        if L % lb == 0:
            return lb
    return 1


def _pick_token_tile(T, H, l_blk, in_isz, out_isz, acc_bytes_per_row, budget):
    # VMEM per token row: double-buffered input slab + double-buffered output + acc scratch.
    per_row = 2 * l_blk * H * in_isz + 2 * H * out_isz + acc_bytes_per_row
    tt = budget // max(per_row, 1)
    tt = max(_SUBLANE, (tt // _SUBLANE) * _SUBLANE)
    tt = min(tt, _MAX_TOKEN_TILE)
    # >= 2 token tiles so the "parallel" axis shards across both TensorCores on v7x
    # (harmless on v5e/v6e); also never bigger than the token count itself.
    tt = min(tt, _round_up((T + 1) // 2, _SUBLANE))
    return int(max(tt, _SUBLANE))


def _wsum_kernel_f32(l_blk, w_ref, x_ref, o_ref):
    # f32 output: accumulate directly into the resident output block (no scratch copy).
    # w_ref: (L,) f32 SMEM (gamma folded in); x_ref: (l_blk, TT, H); o_ref: (TT, H) f32.
    lb = pl.program_id(1)

    @pl.when(lb == 0)
    def _init():
        o_ref[...] = jnp.zeros_like(o_ref)

    base = lb * l_blk
    acc = o_ref[...]
    for j in range(l_blk):  # static unroll over the layer block
        acc = acc + w_ref[base + j] * x_ref[j].astype(jnp.float32)
    o_ref[...] = acc


def _wsum_kernel_acc(l_blk, w_ref, x_ref, o_ref, acc_ref):
    # Non-f32 output (e.g. bf16): f32 accumulator scratch, cast once on the final store.
    lb = pl.program_id(1)

    @pl.when(lb == 0)
    def _init():
        acc_ref[...] = jnp.zeros_like(acc_ref)

    base = lb * l_blk
    acc = acc_ref[...]
    for j in range(l_blk):
        acc = acc + w_ref[base + j] * x_ref[j].astype(jnp.float32)
    acc_ref[...] = acc

    @pl.when(lb == pl.num_programs(1) - 1)
    def _finalize():
        o_ref[...] = acc_ref[...].astype(o_ref.dtype)


def bert_embedder_weighted(hidden_states, bert_weights, bert_gamma, *, token_tile=None):
    """out = bert_gamma * sum_l bert_weights[l] * hidden_states[l]   (bert_mode=='weighted')

    hidden_states: (L, B, S, H) f32 or bf16
    bert_weights : (L, 1) f32
    bert_gamma   : (1, 1) f32
    returns      : (B, S, H) in hidden_states.dtype
    """
    L, B, S, H = hidden_states.shape
    T = B * S
    x = hidden_states.reshape(L, T, H)          # contiguous reshape: no HBM copy, no padding

    in_dt = hidden_states.dtype
    out_dt = hidden_states.dtype
    in_isz = jnp.dtype(in_dt).itemsize
    out_isz = jnp.dtype(out_dt).itemsize
    direct_f32 = jnp.dtype(out_dt) == jnp.dtype(jnp.float32)
    acc_row_bytes = 0 if direct_f32 else H * 4

    l_blk = _pick_layer_block(L)

    vmem_cap = _vmem_capacity_bytes()
    budget = max(vmem_cap - (16 << 20), 8 << 20)   # leave compiler-internal headroom

    if token_tile is None:
        token_tile = _pick_token_tile(T, H, l_blk, in_isz, out_isz, acc_row_bytes, budget)
    else:
        token_tile = max(_SUBLANE, _round_up(int(token_tile), _SUBLANE))  # (8,128) rule

    grid = (pl.cdiv(T, token_tile), L // l_blk)    # ragged last token tile, no pad/slice

    # Fold gamma into the per-layer weights: one fewer (TT, H) multiply per step.
    scaled_w = (bert_gamma.reshape(()) * bert_weights.reshape(L)).astype(jnp.float32)

    needed = (2 * l_blk * token_tile * H * in_isz      # double-buffered input slab
              + 2 * token_tile * H * out_isz           # double-buffered output
              + token_tile * acc_row_bytes             # f32 accumulator (bf16 path only)
              + (2 << 20))
    vmem_limit = int(min(max(needed, 16 << 20), vmem_cap - (8 << 20)))

    if direct_f32:
        kernel = functools.partial(_wsum_kernel_f32, l_blk)
        scratch = ()
    else:
        kernel = functools.partial(_wsum_kernel_acc, l_blk)
        scratch = (pltpu.VMEM((token_tile, H), jnp.float32),)

    out = pl.pallas_call(
        kernel,
        out_shape=jax.ShapeDtypeStruct((T, H), out_dt),
        grid=grid,
        in_specs=[
            pl.BlockSpec(memory_space=pltpu.MemorySpace.SMEM),               # folded weights
            pl.BlockSpec((l_blk, token_tile, H), lambda i, l: (l, i, 0)),    # layer slab
        ],
        out_specs=pl.BlockSpec((token_tile, H), lambda i, l: (i, 0)),
        scratch_shapes=scratch,
        compiler_params=pltpu.CompilerParams(
            dimension_semantics=("parallel", "arbitrary"),
            vmem_limit_bytes=vmem_limit),
    )(scaled_w, x)

    return out.reshape(B, S, H)


def _xavier_normal(key, shape):
    # nn.init.xavier_normal_ for a 2D tensor: std = sqrt(2 / (fan_in + fan_out))
    fan_out, fan_in = shape
    std = (2.0 / (fan_in + fan_out)) ** 0.5
    return std * jax.random.normal(key, shape, dtype=jnp.float32)


if __name__ == "__main__":
    # Small, BERT-like shapes. S=9 -> B*S=18 exercises the ragged-last-tile path.
    L, B, S, H = 4, 2, 9, 128

    key = jax.random.PRNGKey(0)
    k_hs, k_w, k_g = jax.random.split(key, 3)

    # Synthetic per-layer encoder hidden states (stand-in for BertCropModel output[1]).
    hidden_states = jax.random.normal(k_hs, (L, B, S, H), dtype=jnp.float32)

    # Module parameters, initialized as in init_weights().
    bert_weights = _xavier_normal(k_w, (L, 1))   # nn.Parameter(FloatTensor(L, 1))
    bert_gamma = _xavier_normal(k_g, (1, 1))     # nn.Parameter(FloatTensor(1, 1))

    # Pure-JAX reference of the forward pass ('weighted' mode).
    ref = bert_gamma[0, 0] * jnp.sum(
        bert_weights[:, 0][:, None, None, None] * hidden_states, axis=0)

    # f32 path (direct accumulation into the resident output block).
    out = jax.block_until_ready(
        bert_embedder_weighted(hidden_states, bert_weights, bert_gamma))
    assert out.shape == (B, S, H)
    assert jnp.allclose(out, ref, atol=1e-5, rtol=1e-5)

    # bf16 path (halved HBM traffic); kernel accumulates in f32, stores bf16.
    out_bf16 = jax.block_until_ready(
        bert_embedder_weighted(hidden_states.astype(jnp.bfloat16),
                               bert_weights, bert_gamma))
    assert out_bf16.shape == (B, S, H)
    assert jnp.allclose(out_bf16.astype(jnp.float32), ref, atol=1e-1, rtol=1e-1)

    print("KERNEL_OK")
</pallas_src>

<mosaic_0001>
module attributes {stable_mosaic.version = 11 : i64} {
  func.func @_wsum_kernel_f32(%arg0: i32, %arg1: i32, %arg2: memref<4xf32, #tpu.memory_space<smem>>, %arg3: memref<4x16x128xf32, #tpu.memory_space<vmem>>, %arg4: memref<16x128xf32, #tpu.memory_space<vmem>>) attributes {dimension_semantics = [#tpu.dimension_semantics<parallel>, #tpu.dimension_semantics<arbitrary>], iteration_bounds = array<i64: 2, 1>, scalar_prefetch = 0 : i64, scratch_operands = 0 : i64, tpu.core_type = #tpu.core_type<tc>, window_params = [{transform_indices = @transform_0, window_bounds = array<i64: 4>}, {transform_indices = @transform_1, window_bounds = array<i64: 4, 16, 128>}, {transform_indices = @transform_2, window_bounds = array<i64: 16, 128>}]} {
    %c0_i32 = arith.constant 0 : i32
    %0 = arith.cmpi eq, %arg1, %c0_i32 : i32
    %1 = arith.extui %0 : i1 to i32
    %c0_i32_0 = arith.constant 0 : i32
    %2 = arith.cmpi ne, %1, %c0_i32_0 : i32
    scf.if %2 {
      %cst = arith.constant 0.000000e+00 : f32
      %38 = vector.broadcast %cst : f32 to vector<16x128xf32>
      %c0_14 = arith.constant 0 : index
      %c0_15 = arith.constant 0 : index
      %39 = vector.load %arg4[%c0_14, %c0_15] : memref<16x128xf32, #tpu.memory_space<vmem>>, vector<16x128xf32>
      tpu.vector_store %arg4[%c0_14, %c0_15], %38 {strides = array<i32>} : memref<16x128xf32, #tpu.memory_space<vmem>>, vector<16x128xf32>,
    } else {
    }
    %c4_i32 = arith.constant 4 : i32
    %3 = arith.muli %arg1, %c4_i32 : i32
    %c0 = arith.constant 0 : index
    %c0_1 = arith.constant 0 : index
    %4 = vector.load %arg4[%c0, %c0_1] : memref<16x128xf32, #tpu.memory_space<vmem>>, vector<16x128xf32>
    %c0_i32_2 = arith.constant 0 : i32
    %5 = arith.addi %3, %c0_i32_2 : i32
    %6 = arith.index_cast %5 : i32 to index
    %7 = memref.load %arg2[%6] : memref<4xf32, #tpu.memory_space<smem>>
    %c0_3 = arith.constant 0 : index
    %c0_4 = arith.constant 0 : index
    %c0_5 = arith.constant 0 : index
    %8 = vector.load %arg3[%c0_3, %c0_4, %c0_5] : memref<4x16x128xf32, #tpu.memory_space<vmem>>, vector<1x16x128xf32>
    %9 = vector.shape_cast %8 : vector<1x16x128xf32> to vector<16x128xf32>
    %10 = vector.broadcast %7 : f32 to vector<16x128xf32>
    %11 = arith.mulf %10, %9 : vector<16x128xf32>
    %12 = arith.addf %4, %11 : vector<16x128xf32>
    %c1_i32 = arith.constant 1 : i32
    %13 = arith.addi %3, %c1_i32 : i32
    %14 = arith.index_cast %13 : i32 to index
    %15 = memref.load %arg2[%14] : memref<4xf32, #tpu.memory_space<smem>>
    %c1 = arith.constant 1 : index
    %c0_6 = arith.constant 0 : index
    %c0_7 = arith.constant 0 : index
    %16 = vector.load %arg3[%c1, %c0_6, %c0_7] : memref<4x16x128xf32, #tpu.memory_space<vmem>>, vector<1x16x128xf32>
    %17 = vector.shape_cast %16 : vector<1x16x128xf32> to vector<16x128xf32>
    %18 = vector.broadcast %15 : f32 to vector<16x128xf32>
    %19 = arith.mulf %18, %17 : vector<16x128xf32>
    %20 = arith.addf %12, %19 : vector<16x128xf32>
    %c2_i32 = arith.constant 2 : i32
    %21 = arith.addi %3, %c2_i32 : i32
    %22 = arith.index_cast %21 : i32 to index
    %23 = memref.load %arg2[%22] : memref<4xf32, #tpu.memory_space<smem>>
    %c2 = arith.constant 2 : index
    %c0_8 = arith.constant 0 : index
    %c0_9 = arith.constant 0 : index
    %24 = vector.load %arg3[%c2, %c0_8, %c0_9] : memref<4x16x128xf32, #tpu.memory_space<vmem>>, vector<1x16x128xf32>
    %25 = vector.shape_cast %24 : vector<1x16x128xf32> to vector<16x128xf32>
    %26 = vector.broadcast %23 : f32 to vector<16x128xf32>
    %27 = arith.mulf %26, %25 : vector<16x128xf32>
    %28 = arith.addf %20, %27 : vector<16x128xf32>
    %c3_i32 = arith.constant 3 : i32
    %29 = arith.addi %3, %c3_i32 : i32
    %30 = arith.index_cast %29 : i32 to index
    %31 = memref.load %arg2[%30] : memref<4xf32, #tpu.memory_space<smem>>
    %c3 = arith.constant 3 : index
    %c0_10 = arith.constant 0 : index
    %c0_11 = arith.constant 0 : index
    %32 = vector.load %arg3[%c3, %c0_10, %c0_11] : memref<4x16x128xf32, #tpu.memory_space<vmem>>, vector<1x16x128xf32>
    %33 = vector.shape_cast %32 : vector<1x16x128xf32> to vector<16x128xf32>
    %34 = vector.broadcast %31 : f32 to vector<16x128xf32>
    %35 = arith.mulf %34, %33 : vector<16x128xf32>
    %36 = arith.addf %28, %35 : vector<16x128xf32>
    %c0_12 = arith.constant 0 : index
    %c0_13 = arith.constant 0 : index
    %37 = vector.load %arg4[%c0_12, %c0_13] : memref<16x128xf32, #tpu.memory_space<vmem>>, vector<16x128xf32>
    tpu.vector_store %arg4[%c0_12, %c0_13], %36 {strides = array<i32>} : memref<16x128xf32, #tpu.memory_space<vmem>>, vector<16x128xf32>,
    return
  }
  func.func @transform_0(%arg0: i32, %arg1: i32) -> i32 {
    %c0_i32 = arith.constant 0 : i32
    %c0_i32_0 = arith.constant 0 : i32
    return %c0_i32 : i32
  }
  func.func @transform_1(%arg0: i32, %arg1: i32) -> (i32, i32, i32) {
    %c0_i32 = arith.constant 0 : i32
    %c0_i32_0 = arith.constant 0 : i32
    return %arg1, %arg0, %c0_i32 : i32, i32, i32
  }
  func.func @transform_2(%arg0: i32, %arg1: i32) -> (i32, i32) {
    %c0_i32 = arith.constant 0 : i32
    %c0_i32_0 = arith.constant 0 : i32
    return %arg0, %c0_i32 : i32, i32
  }
}

</mosaic_0001>

<llo_original>
// kernel: tpu_custom_call.1
$region0: #{tpu_custom_call.1}
  #allocation0 [shape = 'u32[]', space=smem, size = 0x4, offset = 0x4, fixed_abs, tag = 'smem constant byte address 0x4 - core index']
  #allocation1 [shape = 'u32[144,128]{1,0:T(1,128)}', space=vmem, size = 0x12000, scoped, tag = 'internal scratch']
  %s0 = inlined_call_operand.vmem [shape: f32[4], index: 0, kind: input, shape index: {}]
  %s1 = inlined_call_operand.vmem [shape: f32[4,18,128], index: 1, kind: input, shape index: {}]
  %s2 = inlined_call_operand.hbm [shape: f32[18,128], index: 2, kind: output, shape index: {}]
  %s3 = sld [smem:[#allocation0]]
  $region101: #{tpu_custom_call.1} parent=0
    _
  %s5 = ssub.s32 1, %s3
  %s6 = scalar_select 0, %s5, %s3
  $region1: #{tpu_custom_call.1} parent=0
    #allocation2 [shape = 'u8[512]{0}', space=smem, size = 0x200, scoped, tag = 'input window, operand 0, single buffered']
    #allocation3 [shape = 's32[2]{0}', space=sflag, size = 0x8, scoped, tag = 'scoped memory for tpu_custom_call.1']
    #allocation4 [shape = 's32[2]{0}', space=sflag, size = 0x8, scoped, tag = 'scoped memory for tpu_custom_call.1']
    #allocation5 [shape = 'u8[65536]{0}', space=vmem, size = 0x10000, scoped, tag = 'input window, operand 1']
    #allocation6 [shape = 'u8[16384]{0}', space=vmem, size = 0x4000, scoped, tag = 'output window, operand 0']
    %7 = vsyncpa [#allocation4], 0
    %8 = vsyncpa [#allocation3], 0
    %s9 = scalar_lea.sflag [#allocation3], 1
    %10 = vsyncpa %s9, 0
    loop: start=0, step=1, limit=4
    $region2: #{tpu_custom_call.1} parent=1 // loop_pre_header
      _
    $region3: #{tpu_custom_call.1} parent=1 // loop_header
      %s12 = sphi 0, %s16
      %p13 = scmp.ge.s32.totalorder %s12, 4
      %s19 = sphi 0, %s31
      %s20 = sphi 0, %s27
      %s21 = sphi 0, %s19
      %s22 = sphi 0, %s20
      %s23 = sphi 0, %s21
      %s24 = sphi 0, %s22
      %s32 = sphi 0, %s32
      %s34 = sphi 0, %s32
      %s35 = sphi 0, %s34
      %s49 = sphi 0, %s35
      %s57 = sphi 0, %s59
      %s60 = sphi 0, %s57
      %s61 = sphi 0, %s60
      %s77 = sphi 0, %s61
      %s83 = sphi 0, %s85
      %s86 = sphi 0, %s83
      %s87 = sphi 0, %s86
      %s103 = sphi 0, %s87
    $region4: #{tpu_custom_call.1} parent=1 // loop_header_branch
      %15 = sbr.rel (%p13) target = $region8
    $region5: #{tpu_custom_call.1} parent=1 // loop_body
      %s17 = ssub.s32 %s12, 1
      %s18 = ssub.s32 %s12, 2
      %s25 = sadd.s32 1, %s20
      %p26 = scmp.ge.s32.totalorder %s25, 1
      %s27 = scalar_select %p26, 0, %s25
      %s28 = sadd.s32 1, %s19
      %s29 = scalar_select %p26, %s28, %s19
      %p30 = scmp.ge.s32.totalorder %s29, 2
      %s31 = scalar_select %p30, 0, %s29
      %s33 = sadd.s32 %s32, 1
      %p36 = scmp.eq.s32.totalorder %s12, 1
      %p37 = scmp.ne.s32.totalorder %s32, %s34
      %p38 = scmp.eq.s32.totalorder %s12, 0
      %p39 = por %p37, %p38
      %p40 = scmp.ne.s32.totalorder %s32, %s34
      %p41 = scmp.eq.s32.totalorder %s17, 1
      %p42 = por %p40, %p41
      %p43 = scmp.ne.s32.totalorder %s34, %s35
      %p44 = scmp.eq.s32.totalorder %s17, 0
      %p45 = por %p43, %p44
      %p46 = scmp.ne.s32.totalorder %s34, %s35
      %p47 = scmp.eq.s32.totalorder %s18, 1
      %p48 = por %p46, %p47
      %p50 = scmp.ne.s32.totalorder %s35, %s49
      %p51 = scmp.eq.s32.totalorder %s18, 0
      %p52 = por %p50, %p51
      %s53 = ssub.s32 %s20, %s27
      %s54 = ssub.s32 %s19, %s31
      %s55 = sor.u32 %s53, %s54
      %p56 = scmp.eq.s32.totalorder %s55, 0
      %s58 = sadd.s32 %s57, 1
      %s59 = scalar_select %p56, %s57, %s58
      %p62 = pneg %p56
      %p63 = scmp.eq.s32.totalorder %s12, 1
      %p64 = por %p62, %p63
      %p65 = scmp.ne.s32.totalorder %s57, %s60
      %p66 = scmp.eq.s32.totalorder %s12, 0
      %p67 = por %p65, %p66
      %p68 = scmp.ne.s32.totalorder %s57, %s60
      %p69 = scmp.eq.s32.totalorder %s17, 1
      %p70 = por %p68, %p69
      %p71 = scmp.ne.s32.totalorder %s60, %s61
      %p72 = scmp.eq.s32.totalorder %s17, 0
      %p73 = por %p71, %p72
      %p74 = scmp.ne.s32.totalorder %s60, %s61
      %p75 = scmp.eq.s32.totalorder %s18, 1
      %p76 = por %p74, %p75
      %p78 = scmp.ne.s32.totalorder %s61, %s77
      %p79 = scmp.eq.s32.totalorder %s18, 0
      %p80 = por %p78, %p79
      %s81 = ssub.s32 %s19, %s31
      %p82 = scmp.eq.s32.totalorder %s81, 0
      %s84 = sadd.s32 %s83, 1
      %s85 = scalar_select %p82, %s83, %s84
      %p88 = pneg %p82
      %p89 = scmp.eq.s32.totalorder %s12, 1
      %p90 = por %p88, %p89
      %p91 = scmp.ne.s32.totalorder %s83, %s86
      %p92 = scmp.eq.s32.totalorder %s12, 0
      %p93 = por %p91, %p92
      %p94 = scmp.ne.s32.totalorder %s83, %s86
      %p95 = scmp.eq.s32.totalorder %s17, 1
      %p96 = por %p94, %p95
      %p97 = scmp.ne.s32.totalorder %s86, %s87
      %p98 = scmp.eq.s32.totalorder %s17, 0
      %p99 = por %p97, %p98
      %p100 = scmp.ne.s32.totalorder %s86, %s87
      %p101 = scmp.eq.s32.totalorder %s18, 1
      %p102 = por %p100, %p101
      %p104 = scmp.ne.s32.totalorder %s87, %s103
      %p105 = scmp.eq.s32.totalorder %s18, 0
      %p106 = por %p104, %p105
      %p107 = scmp.le.s32.totalorder 1, %s12
      %p108 = scmp.lt.s32.totalorder %s12, 3
      %p109 = pnand %p107, %p108
      %p110 = pneg %p109
      // Predicated region
      $region9: #{tpu_custom_call.1} parent=5 // pred_check
        _
      $region10: #{tpu_custom_call.1} parent=5 // pred_check_branch
        %112 = sbr.rel (%p109) target = $region12
      $region11: #{tpu_custom_call.1} parent=5 // pred_region
        %s113 = ssub.s32 %s12, 1
        // Predicated region
        $region13: #{tpu_custom_call.1} parent=11 // pred_check
          %p114 = pneg %p45
        $region14: #{tpu_custom_call.1} parent=11 // pred_check_branch
          %116 = sbr.rel (%p114) target = $region16
        $region15: #{tpu_custom_call.1} parent=11 // pred_region
          %s118 = ssub.s32 16, 16
          %119 = vsyncadd [#allocation4], %s118
          %s121 = sshll.u32 %s0, 4
          %s122 = int_to_ptr.vmem [resolvable:$true] %s121
          %124 = dma.vmem_to_smem %s122, 16, [#allocation2], [#allocation4]
        $region16: #{tpu_custom_call.1} parent=11 // pred_fallthru
          _
      $region12: #{tpu_custom_call.1} parent=5 // pred_fallthru
        _
      %p125 = scmp.lt.s32.totalorder %s12, 2
      // Predicated region
      $region17: #{tpu_custom_call.1} parent=5 // pred_check
        %p126 = pneg %p125
      $region18: #{tpu_custom_call.1} parent=5 // pred_check_branch
        %128 = sbr.rel (%p126) target = $region20
      $region19: #{tpu_custom_call.1} parent=5 // pred_region
        // Predicated region
        $region21: #{tpu_custom_call.1} parent=19 // pred_check
          %p129 = pneg %p67
        $region22: #{tpu_custom_call.1} parent=19 // pred_check_branch
          %131 = sbr.rel (%p129) target = $region24
        $region23: #{tpu_custom_call.1} parent=19 // pred_region
          %s132 = sand.u32 %s57, 1
          %s133 = sand.u32 %s57, 1
          %s134 = smul.addr %s133, 64
          %s135 = scalar_lea.vmem [#allocation5], %s134
          %s136 = smul.u32 4, %s20
          %s137 = smul.u32 2, %s19
          %s138 = ssub.s32 3, %s137
          %p139 = scmp.lt.s32.totalorder %s138, 2
          %s140 = scalar_select %p139, %s138, 2
          %s141 = smul.u32 512, %s140
          %p142 = scmp.ne.s32.totalorder 0, %s141
          %s143 = smul.addr %s136, 3
          %s144 = sadd.s32 %s137, %s143
          %s145 = smul.addr %s144, 8
          %s146 = scalar_lea.vmem %s1, %s145
          // Predicated region
          $region25: #{tpu_custom_call.1} parent=23 // pred_check
            %p147 = pneg %p142
          $region26: #{tpu_custom_call.1} parent=23 // pred_check_branch
            %149 = sbr.rel (%p147) target = $region28
          $region27: #{tpu_custom_call.1} parent=23 // pred_region
            // Predicated region
            $region29: #{tpu_custom_call.1} parent=27 // pred_check
              _
            $region30: #{tpu_custom_call.1} parent=27 // pred_check_branch
              %151 = sbr.rel (0) target = $region32
            $region31: #{tpu_custom_call.1} parent=27 // pred_region
              // Predicated region
              $region51: #{tpu_custom_call.1} parent=31 // pred_check
                _
              $region52: #{tpu_custom_call.1} parent=31 // pred_check_branch
                %220 = sbr.rel (0) target = $region54
              $region53: #{tpu_custom_call.1} parent=31 // pred_region
                %s221 = sshrl.u32 %s140, 1
                // While loop
                $region55: #{tpu_custom_call.1} parent=53 // loop_pre_header
                  _
                $region56: #{tpu_custom_call.1} parent=53 // loop_header
                  %s223 = sphi 0, %s225
                  %p224 = scmp.ge.s32.totalorder %s223, %s221
                  %s228 = sphi 0, %s249
                  %s229 = sphi %s146, %s252
                  %s230 = sphi %s135, %s253
                $region57: #{tpu_custom_call.1} parent=53 // loop_header_branch
                  %227 = sbr.rel (%p224) target = $region61
                $region58: #{tpu_custom_call.1} parent=53 // loop_body
                  %v231 = vld [vmem:[%s229] sm:$0xff]
                  %232 = vst [vmem:[%s230] sm:$0xff] %v231
                  %v233 = vld [vmem:[%s229 + $0x8] sm:$0xff]
                  %234 = vst [vmem:[%s230 + $0x8] sm:$0xff] %v233
                  %v235 = vld [vmem:[%s229 + $0x18] sm:$0xff]
                  %236 = vst [vmem:[%s230 + $0x10] sm:$0xff] %v235
                  %v237 = vld [vmem:[%s229 + $0x20] sm:$0xff]
                  %238 = vst [vmem:[%s230 + $0x18] sm:$0xff] %v237
                  %v239 = vld [vmem:[%s229 + $0x30] sm:$0xff]
                  %240 = vst [vmem:[%s230 + $0x20] sm:$0xff] %v239
                  %v241 = vld [vmem:[%s229 + $0x38] sm:$0xff]
                  %242 = vst [vmem:[%s230 + $0x28] sm:$0xff] %v241
                  %v243 = vld [vmem:[%s229 + $0x48] sm:$0xff]
                  %244 = vst [vmem:[%s230 + $0x30] sm:$0xff] %v243
                  %v245 = vld [vmem:[%s229 + $0x50] sm:$0xff]
                  %246 = vst [vmem:[%s230 + $0x38] sm:$0xff] %v245
                  %s247 = sadd.s32 1, %s228
                  %p248 = scmp.ge.s32.totalorder %s247, %s221
                  %s249 = scalar_select %p248, 0, %s247
                  %s250 = smul.u32 %s249, 16
                  %s251 = smul.u32 %s249, 16
                  %s252 = scalar_lea.vmem %s146, %s250
                  %s253 = scalar_lea.vmem %s135, %s251 [#allocation5]
                $region59: #{tpu_custom_call.1} parent=53 // loop_footer
                  %s225 = sadd.s32 %s223, 1
                $region60: #{tpu_custom_call.1} parent=53 // loop_footer_branch
                  %222 = sbr.rel target = $region56
                $region61: #{tpu_custom_call.1} parent=53 // loop_exit
                  _
                %s254 = sshrl.u32 %s140, 1
                %s255 = sand.u32 %s140, 1
                %s256 = smul.u32 %s254, 2
                %s257 = smul.u32 8, %s256
                %s258 = scalar_lea.vmem %s146, %s257
                %s259 = smul.u32 8, %s256
                %s260 = scalar_lea.vmem %s135, %s259 [#allocation5]
                // While loop
                $region62: #{tpu_custom_call.1} parent=53 // loop_pre_header
                  _
                $region63: #{tpu_custom_call.1} parent=53 // loop_header
                  %s262 = sphi 0, %s264
                  %p263 = scmp.ge.s32.totalorder %s262, %s255
                  %s267 = sphi 0, %s280
                  %s268 = sphi %s258, %s283
                  %s269 = sphi %s260, %s284
                $region64: #{tpu_custom_call.1} parent=53 // loop_header_branch
                  %266 = sbr.rel (%p263) target = $region68
                $region65: #{tpu_custom_call.1} parent=53 // loop_body
                  %v270 = vld [vmem:[%s268] sm:$0xff]
                  %271 = vst [vmem:[%s269] sm:$0xff] %v270
                  %v272 = vld [vmem:[%s268 + $0x18] sm:$0xff]
                  %273 = vst [vmem:[%s269 + $0x10] sm:$0xff] %v272
                  %v274 = vld [vmem:[%s268 + $0x30] sm:$0xff]
                  %275 = vst [vmem:[%s269 + $0x20] sm:$0xff] %v274
                  %v276 = vld [vmem:[%s268 + $0x48] sm:$0xff]
                  %277 = vst [vmem:[%s269 + $0x30] sm:$0xff] %v276
                  %s278 = sadd.s32 1, %s267
                  %p279 = scmp.ge.s32.totalorder %s278, %s255
                  %s280 = scalar_select %p279, 0, %s278
                  %s281 = smul.u32 %s280, 8
                  %s282 = smul.u32 %s280, 8
                  %s283 = scalar_lea.vmem %s258, %s281
                  %s284 = scalar_lea.vmem %s260, %s282 [#allocation5]
                $region66: #{tpu_custom_call.1} parent=53 // loop_footer
                  %s264 = sadd.s32 %s262, 1
                $region67: #{tpu_custom_call.1} parent=53 // loop_footer_branch
                  %261 = sbr.rel target = $region63
                $region68: #{tpu_custom_call.1} parent=53 // loop_exit
                  _
              $region54: #{tpu_custom_call.1} parent=31 // pred_fallthru
                _
              // Predicated region
              $region69: #{tpu_custom_call.1} parent=31 // pred_check
                _
              $region70: #{tpu_custom_call.1} parent=31 // pred_check_branch
                %286 = sbr.rel target = $region72
              $region71: #{tpu_custom_call.1} parent=31 // pred_region
                _
              $region72: #{tpu_custom_call.1} parent=31 // pred_fallthru
                _
            $region32: #{tpu_custom_call.1} parent=27 // pred_fallthru
              _
            // Predicated region
            $region33: #{tpu_custom_call.1} parent=27 // pred_check
              _
            $region34: #{tpu_custom_call.1} parent=27 // pred_check_branch
              %153 = sbr.rel target = $region36
            $region35: #{tpu_custom_call.1} parent=27 // pred_region
              %s155 = sshrl.u32 %s140, 1
              // While loop
              $region37: #{tpu_custom_call.1} parent=35 // loop_pre_header
                _
              $region38: #{tpu_custom_call.1} parent=35 // loop_header
                %s157 = sphi 0, %s159
                %p158 = scmp.ge.s32.totalorder %s157, %s155
                %s162 = sphi 0, %s183
                %s163 = sphi %s146, %s186
                %s164 = sphi %s135, %s187
              $region39: #{tpu_custom_call.1} parent=35 // loop_header_branch
                %161 = sbr.rel (%p158) target = $region43
              $region40: #{tpu_custom_call.1} parent=35 // loop_body
                %v165 = vld [vmem:[%s163] sm:$0xff]
                %166 = vst [vmem:[%s164] sm:$0xff] %v165
                %v167 = vld [vmem:[%s163 + $0x8] sm:$0xff]
                %168 = vst [vmem:[%s164 + $0x8] sm:$0xff] %v167
                %v169 = vld [vmem:[%s163 + $0x18] sm:$0xff]
                %170 = vst [vmem:[%s164 + $0x10] sm:$0xff] %v169
                %v171 = vld [vmem:[%s163 + $0x20] sm:$0xff]
                %172 = vst [vmem:[%s164 + $0x18] sm:$0xff] %v171
                %v173 = vld [vmem:[%s163 + $0x30] sm:$0xff]
                %174 = vst [vmem:[%s164 + $0x20] sm:$0xff] %v173
                %v175 = vld [vmem:[%s163 + $0x38] sm:$0xff]
                %176 = vst [vmem:[%s164 + $0x28] sm:$0xff] %v175
                %v177 = vld [vmem:[%s163 + $0x48] sm:$0xff]
                %178 = vst [vmem:[%s164 + $0x30] sm:$0xff] %v177
                %v179 = vld [vmem:[%s163 + $0x50] sm:$0xff]
                %180 = vst [vmem:[%s164 + $0x38] sm:$0xff] %v179
                %s181 = sadd.s32 1, %s162
                %p182 = scmp.ge.s32.totalorder %s181, %s155
                %s183 = scalar_select %p182, 0, %s181
                %s184 = smul.u32 %s183, 16
                %s185 = smul.u32 %s183, 16
                %s186 = scalar_lea.vmem %s146, %s184
                %s187 = scalar_lea.vmem %s135, %s185 [#allocation5]
              $region41: #{tpu_custom_call.1} parent=35 // loop_footer
                %s159 = sadd.s32 %s157, 1
              $region42: #{tpu_custom_call.1} parent=35 // loop_footer_branch
                %156 = sbr.rel target = $region38
              $region43: #{tpu_custom_call.1} parent=35 // loop_exit
                _
              %s188 = sshrl.u32 %s140, 1
              %s189 = sand.u32 %s140, 1
              %s190 = smul.u32 %s188, 2
              %s191 = smul.u32 8, %s190
              %s192 = scalar_lea.vmem %s146, %s191
              %s193 = smul.u32 8, %s190
              %s194 = scalar_lea.vmem %s135, %s193 [#allocation5]
              // While loop
              $region44: #{tpu_custom_call.1} parent=35 // loop_pre_header
                _
              $region45: #{tpu_custom_call.1} parent=35 // loop_header
                %s196 = sphi 0, %s198
                %p197 = scmp.ge.s32.totalorder %s196, %s189
                %s201 = sphi 0, %s214
                %s202 = sphi %s192, %s217
                %s203 = sphi %s194, %s218
              $region46: #{tpu_custom_call.1} parent=35 // loop_header_branch
                %200 = sbr.rel (%p197) target = $region50
              $region47: #{tpu_custom_call.1} parent=35 // loop_body
                %v204 = vld [vmem:[%s202] sm:$0xff]
                %205 = vst [vmem:[%s203] sm:$0xff] %v204
                %v206 = vld [vmem:[%s202 + $0x18] sm:$0xff]
                %207 = vst [vmem:[%s203 + $0x10] sm:$0xff] %v206
                %v208 = vld [vmem:[%s202 + $0x30] sm:$0xff]
                %209 = vst [vmem:[%s203 + $0x20] sm:$0xff] %v208
                %v210 = vld [vmem:[%s202 + $0x48] sm:$0xff]
                %211 = vst [vmem:[%s203 + $0x30] sm:$0xff] %v210
                %s212 = sadd.s32 1, %s201
                %p213 = scmp.ge.s32.totalorder %s212, %s189
                %s214 = scalar_select %p213, 0, %s212
                %s215 = smul.u32 %s214, 8
                %s216 = smul.u32 %s214, 8
                %s217 = scalar_lea.vmem %s192, %s215
                %s218 = scalar_lea.vmem %s194, %s216 [#allocation5]
              $region48: #{tpu_custom_call.1} parent=35 // loop_footer
                %s198 = sadd.s32 %s196, 1
              $region49: #{tpu_custom_call.1} parent=35 // loop_footer_branch
                %195 = sbr.rel target = $region45
              $region50: #{tpu_custom_call.1} parent=35 // loop_exit
                _
            $region36: #{tpu_custom_call.1} parent=27 // pred_fallthru
              _
          $region28: #{tpu_custom_call.1} parent=23 // pred_fallthru
            _
          %287 = vnop
        $region24: #{tpu_custom_call.1} parent=19 // pred_fallthru
          _
      $region20: #{tpu_custom_call.1} parent=5 // pred_fallthru
        _
      %p288 = scmp.le.s32.totalorder 1, %s12
      %p289 = scmp.lt.s32.totalorder %s12, 3
      %p290 = pnand %p288, %p289
      %p291 = pneg %p290
      // Predicated region
      $region73: #{tpu_custom_call.1} parent=5 // pred_check
        _
      $region74: #{tpu_custom_call.1} parent=5 // pred_check_branch
        %293 = sbr.rel (%p290) target = $region76
      $region75: #{tpu_custom_call.1} parent=5 // pred_region
        %s294 = ssub.s32 %s12, 1
        // Predicated region
        $region77: #{tpu_custom_call.1} parent=75 // pred_check
          %p295 = pneg %p45
        $region78: #{tpu_custom_call.1} parent=75 // pred_check_branch
          %297 = sbr.rel (%p295) target = $region80
        $region79: #{tpu_custom_call.1} parent=75 // pred_region
          %298 = dma.done [#allocation4], 16
        $region80: #{tpu_custom_call.1} parent=75 // pred_fallthru
          _
        %s299 = sand.u32 %s60, 1
        %s300 = sand.u32 %s60, 1
        %s301 = smul.addr %s300, 64
        %s302 = scalar_lea.vmem [#allocation5], %s301
        // Predicated region
        $region81: #{tpu_custom_call.1} parent=75 // pred_check
          %p303 = pneg %p73
        $region82: #{tpu_custom_call.1} parent=75 // pred_check_branch
          %305 = sbr.rel (%p303) target = $region84
        $region83: #{tpu_custom_call.1} parent=75 // pred_region
          _
        $region84: #{tpu_custom_call.1} parent=75 // pred_fallthru
          _
        %306 = sfence
        %p307 = pneg %p45
        %p308 = pneg %p42
        %s309 = sand.u32 %s60, 1
        %s310 = sand.u32 %s60, 1
        %s311 = smul.addr %s310, 64
        %s312 = scalar_lea.vmem [#allocation5], %s311
        %p313 = pneg %p73
        %p314 = pneg %p70
        %p315 = pneg %p99
        %p316 = pneg %p96
        %s317 = sand.u32 %s86, 1
        %s318 = scalar_lea.sflag [#allocation3], %s317
        %s319 = sand.u32 %s86, 1
        %s320 = smul.addr %s319, 16
        %s321 = scalar_lea.vmem [#allocation6], %s320
        %s322 = smul.u32 4, %s22
        %s323 = smul.u32 2, %s21
        %s324 = ssub.s32 3, %s323
        %p325 = scmp.lt.s32.totalorder %s324, 2
        %s326 = scalar_select %p325, %s324, 2
        %s327 = smul.u32 512, %s326
        %s328 = smul.u32 2, %s21
        %s329 = ssub.s32 3, %s328
        %p330 = scmp.lt.s32.totalorder %s329, 2
        %s331 = scalar_select %p330, %s329, 2
        %s332 = smul.u32 128, %s331
        %p333 = scmp.eq.s32.totalorder %s22, 0
        // Predicated region
        $region85: #{tpu_custom_call.1} parent=75 // pred_check
          %p334 = pneg %p333
        $region86: #{tpu_custom_call.1} parent=75 // pred_check_branch
          %336 = sbr.rel (%p334) target = $region88
        $region87: #{tpu_custom_call.1} parent=75 // pred_region
          %337 = vst [vmem:[%s321] sm:$0xff] 0.0
          %338 = vst [vmem:[%s321 + $0x8] sm:$0xff] 0.0
        $region88: #{tpu_custom_call.1} parent=75 // pred_fallthru
          _
        %s339 = smul.u32 %s22, 4
        %v340 = vld [vmem:[%s321] sm:$0xff]
        %v341 = vld [vmem:[%s321 + $0x8] sm:$0xff]
        %s342 = sld [smem:[#allocation2 + %s339]]
        %v343 = vld [vmem:[%s302] sm:$0xff]
        %v344 = vld [vmem:[%s302 + $0x8] sm:$0xff]
        %v345 = vstv %s342
        %v346 = vmul.f32 %v345, %v343
        %v347 = vmul.f32 %v345, %v344
        %v348 = vadd.f32 %v340, %v346
        %v349 = vadd.f32 %v341, %v347
        %s350 = sadd.s32 %s339, 1
        %s351 = sld [smem:[#allocation2 + %s350]]
        %s352 = scalar_lea.vmem %s302, 16 [#allocation5]
        %v353 = vld [vmem:[%s352] sm:$0xff]
        %v354 = vld [vmem:[%s352 + $0x8] sm:$0xff]
        %v355 = vstv %s351
        %v356 = vmul.f32 %v355, %v353
        %v357 = vmul.f32 %v355, %v354
        %v358 = vadd.f32 %v348, %v356
        %v359 = vadd.f32 %v349, %v357
        %s360 = sadd.s32 %s339, 2
        %s361 = sld [smem:[#allocation2 + %s360]]
        %s362 = scalar_lea.vmem %s302, 32 [#allocation5]
        %v363 = vld [vmem:[%s362] sm:$0xff]
        %v364 = vld [vmem:[%s362 + $0x8] sm:$0xff]
        %v365 = vstv %s361
        %v366 = vmul.f32 %v365, %v363
        %v367 = vmul.f32 %v365, %v364
        %v368 = vadd.f32 %v358, %v366
        %v369 = vadd.f32 %v359, %v367
        %s370 = sadd.s32 %s339, 3
        %s371 = sld [smem:[#allocation2 + %s370]]
        %s372 = scalar_lea.vmem %s302, 48 [#allocation5]
        %v373 = vld [vmem:[%s372] sm:$0xff]
        %v374 = vld [vmem:[%s372 + $0x8] sm:$0xff]
        %v375 = vstv %s371
        %v376 = vmul.f32 %v375, %v373
        %v377 = vmul.f32 %v375, %v374
        %v378 = vadd.f32 %v368, %v376
        %v379 = vadd.f32 %v369, %v377
        %380 = vst [vmem:[%s321] sm:$0xff] %v378
        %381 = vst [vmem:[%s321 + $0x8] sm:$0xff] %v379
        %s382 = sand.u32 %s86, 1
        %s383 = scalar_lea.sflag [#allocation3], %s382
        %s384 = sand.u32 %s86, 1
        %s385 = smul.addr %s384, 16
        %s386 = scalar_lea.vmem [#allocation6], %s385
        // Predicated region
        $region89: #{tpu_custom_call.1} parent=75 // pred_check
          %p387 = pneg %p96
        $region90: #{tpu_custom_call.1} parent=75 // pred_check_branch
          %389 = sbr.rel (%p387) target = $region92
        $region91: #{tpu_custom_call.1} parent=75 // pred_region
          %s390 = smul.u32 2, %s21
          %s391 = ssub.s32 3, %s390
          %p392 = scmp.lt.s32.totalorder %s391, 2
          %s393 = scalar_select %p392, %s391, 2
          %s394 = smul.u32 128, %s393
          %s396 = ssub.s32 256, %s394
          %397 = vsyncadd %s383, %s396
          %p398 = scmp.ne.s32.totalorder 0, %s394
          %s399 = smul.addr %s390, 128
          %s400 = scalar_lea.hbm %s2, %s399
          %s401 = smul.u32 8, %s393
          %s402 = sshll.u32 %s386, 4
          %s403 = int_to_ptr.vmem [resolvable:$true] %s402
          %s404 = sshll.u32 %s401, 4
          %408 = dma.vmem_to_hbm [thread:$0]  (%p398), %s403, %s404, %s400, %s383, 128, 128, 8
        $region92: #{tpu_custom_call.1} parent=75 // pred_fallthru
          _
      $region76: #{tpu_custom_call.1} parent=5 // pred_fallthru
        _
      %p409 = scmp.le.s32.totalorder 2, %s12
      // Predicated region
      $region93: #{tpu_custom_call.1} parent=5 // pred_check
        %p410 = pneg %p409
      $region94: #{tpu_custom_call.1} parent=5 // pred_check_branch
        %412 = sbr.rel (%p410) target = $region96
      $region95: #{tpu_custom_call.1} parent=5 // pred_region
        %s413 = ssub.s32 %s12, 2
        // Predicated region
        $region97: #{tpu_custom_call.1} parent=95 // pred_check
          %p414 = pneg %p102
        $region98: #{tpu_custom_call.1} parent=95 // pred_check_branch
          %416 = sbr.rel (%p414) target = $region100
        $region99: #{tpu_custom_call.1} parent=95 // pred_region
          %s417 = sand.u32 %s87, 1
          %s418 = scalar_lea.sflag [#allocation3], %s417
          %s419 = sand.u32 %s87, 1
          %s420 = smul.addr %s419, 16
          %s421 = scalar_lea.vmem [#allocation6], %s420
          %422 = dma.done %s418, 256
        $region100: #{tpu_custom_call.1} parent=95 // pred_fallthru
          _
      $region96: #{tpu_custom_call.1} parent=5 // pred_fallthru
        _
    $region6: #{tpu_custom_call.1} parent=1 // loop_footer
      %s16 = sadd.s32 1, %s12
    $region7: #{tpu_custom_call.1} parent=1 // loop_footer_branch
      %11 = sbr.rel target = $region3
    $region8: #{tpu_custom_call.1} parent=1 // loop_exit
      _
    %423 = vsyncpa [#allocation3], 1
    %s424 = scalar_lea.sflag [#allocation3], 1
    %425 = vsyncpa %s424, 1
    %426 = vsyncpa [#allocation4], 1
    %s427 = scalar_lea.sflag [#allocation4], 1
    %428 = vsyncpa %s427, 1

</llo_original>
